<compile_context>
chip_gen: v7x
topology: tpu7x:2x2x1
jax: 0.10.0
libtpu: 0.0.40
codegen_flags: <defaults>
</compile_context>

<pallas_src>
import jax
import jax.numpy as jnp
from jax import lax
from jax.experimental import pallas as pl
from jax.experimental.pallas import tpu as pltpu

EPS = 1e-5   # PyTorch BatchNorm1d default eps


def _shortcut_pool_kernel(x_ref, xm_ref, w1_ref, b1_ref, g1_ref, bt1_ref,
                          w2_ref, b2_ref,
                          h2_ref, sum2_ref, sq2_ref,
                          sum1, sq1, sc1, sh1):
    phase = pl.program_id(0)      # 0: BN1 stats over all groups, 1: main pass
    g = pl.program_id(1)          # batch-group index
    ng = pl.num_programs(1)

    rows = x_ref.shape[0]         # NB * L   (flattened batch-group rows)
    half = rows // 2              # NB * L/2 (rows after the stride-2 shortcut conv)
    quarter = rows // 4           # NB * L/4 (rows surviving the 2nd stride-2 conv)

    # ---- init cross-group accumulators once (very first grid step) -----------
    @pl.when((phase == 0) & (g == 0))
    def _init():
        sum1[...] = jnp.zeros_like(sum1)
        sq1[...] = jnp.zeros_like(sq1)
        sum2_ref[...] = jnp.zeros_like(sum2_ref)
        sq2_ref[...] = jnp.zeros_like(sq2_ref)

    # ---- phase 0: shortcut conv on even rows, accumulate BN1 sum / sumsq -----
    @pl.when(phase == 0)
    def _phase0():
        xe = x_ref[pl.ds(0, half, 2), :]                   # rows 0,2,... per sample
        h1 = jnp.dot(xe, w1_ref[...],
                     preferred_element_type=jnp.float32) + b1_ref[...]
        sum1[...] += jnp.sum(h1, axis=0, keepdims=True)
        sq1[...] += jnp.sum(h1 * h1, axis=0, keepdims=True)

    # ---- finalize BN1 -> fused per-channel scale / shift (runs once) ---------
    @pl.when((phase == 1) & (g == 0))
    def _finalize_bn1():
        inv = 1.0 / (ng * half)
        mean = sum1[...] * inv
        var = jnp.maximum(sq1[...] * inv - mean * mean, 0.0)
        sc1[...] = g1_ref[...] * lax.rsqrt(var + EPS)
        sh1[...] = bt1_ref[...] - mean * sc1[...]

    # ---- phase 1: BN1 + pool + 2nd conv; write h2; accumulate BN2 stats ------
    @pl.when(phase == 1)
    def _phase1():
        # Only rows 0,2,4,... of (bn1(conv) + pool) reach the k=1/stride-2 second
        # conv, so compute exactly those quarter rows: the conv taps x rows
        # 0,4,...; each pool window covers inputs_mid rows {4j, 4j+1, 4j+2},
        # all in range because L % 4 == 0.
        xq = x_ref[pl.ds(0, quarter, 4), :]
        h1 = jnp.dot(xq, w1_ref[...],
                     preferred_element_type=jnp.float32) + b1_ref[...]
        a = xm_ref[pl.ds(0, quarter, 4), :]
        b = xm_ref[pl.ds(1, quarter, 4), :]
        c = xm_ref[pl.ds(2, quarter, 4), :]
        pooled = jnp.maximum(jnp.maximum(a, b), c).astype(jnp.float32)
        s = h1 * sc1[...] + sh1[...] + pooled              # fused BN1 + residual add
        h2 = jnp.dot(s.astype(w2_ref.dtype), w2_ref[...],
                     preferred_element_type=jnp.float32) + b2_ref[...]
        h2_ref[...] = h2.astype(h2_ref.dtype)              # sublane-full, lane-dense
        sum2_ref[...] += jnp.sum(h2, axis=0, keepdims=True)
        sq2_ref[...] += jnp.sum(h2 * h2, axis=0, keepdims=True)


def _pick_block_batch(N, L, Cin, F, F2, itemsize, vmem_budget_bytes):
    """#samples per grid step: a divisor of N whose double-buffered blocks fit the
    VMEM budget; prefer the smallest one that already fills the MXU M dimension
    (>= 256 rows) so the phase-1 live set stays bounded."""
    L2, L3 = L // 2, L // 4

    def ok(nb):
        if N % nb:
            return False
        if nb != N and (nb * L3) % 8:                      # keep blocks sublane-full
            return False
        blocks = nb * L * (Cin + F) * itemsize + nb * L3 * F2 * 4
        fixed = (Cin * F + F * F2 + 6 * F + 6 * F2) * itemsize + 64 * 1024
        return 2 * blocks + fixed <= vmem_budget_bytes     # 2x: double buffering

    fitting = [d for d in range(1, N + 1) if ok(d)]
    if not fitting:
        return 1
    for d in fitting:                                      # ascending
        if d * L2 >= 256:
            return d
    return fitting[-1]


def shortcut_pool(x_nlc, xm_nlc, params, *, block_batch=None,
                  vmem_budget_bytes=20 * 1024 * 1024):
    """Fused ShortcutPool forward.

    x_nlc : (N, L, Cin)  `inputs`      (channels-last)
    xm_nlc: (N, L, F)    `inputs_mid`  (channels-last)
    returns (N, L//4, 2F) channels-last.
    """
    w1, b1, g1, bt1, w2, b2, g2, bt2 = params
    N, L, Cin = x_nlc.shape
    Nm, Lm, F = xm_nlc.shape
    assert (Nm, Lm) == (N, L)
    assert L % 4 == 0, "kernel assumes L divisible by 4"
    F2 = w2.shape[1]
    L3 = L // 4

    itemsize = jnp.dtype(x_nlc.dtype).itemsize
    nb = block_batch or _pick_block_batch(N, L, Cin, F, F2, itemsize,
                                          vmem_budget_bytes)
    assert N % nb == 0
    ng = N // nb

    # Flat, lane-dense 2-D views (free reshapes): one batch-group block = one big
    # MXU matmul, and sublane-full unmasked output stores.
    x_flat = x_nlc.reshape(N * L, Cin)
    xm_flat = xm_nlc.reshape(N * L, F)

    row = lambda v: v.reshape(1, -1)          # lane-aligned (1, C) parameter rows

    def x_map(p, g):                          # read in both phases
        return (g, 0)

    def xm_map(p, g):                         # only used in phase 1; pinned to block
        return (jnp.where(p == 1, g, 0), 0)   # 0 in phase 0 -> its prefetch is reused

    def h2_map(p, g):                         # real writes only happen in phase 1
        return (jnp.where(p == 1, g, 0), 0)

    def const_map(p, g):
        return (0, 0)

    flops = 2 * N * ((L // 2) * Cin * F + L3 * (Cin * F + F * F2))
    bytes_accessed = (itemsize * (2 * N * L * Cin + N * L * F)     # x twice, xm once
                      + itemsize * N * L3 * F2                     # h2 write
                      + itemsize * (Cin * F + F * F2 + 3 * F + F2)
                      + 4 * 2 * F2)                                # BN2 stats out

    h2_flat, sum2, sq2 = pl.pallas_call(
        _shortcut_pool_kernel,
        out_shape=(
            jax.ShapeDtypeStruct((N * L3, F2), x_nlc.dtype),   # un-normalized conv1
            jax.ShapeDtypeStruct((1, F2), jnp.float32),        # BN2 sum
            jax.ShapeDtypeStruct((1, F2), jnp.float32),        # BN2 sum of squares
        ),
        grid_spec=pltpu.PrefetchScalarGridSpec(
            num_scalar_prefetch=0,
            grid=(2, ng),                                      # (phase, batch group)
            in_specs=[
                pl.BlockSpec((nb * L, Cin), x_map),            # inputs (flattened)
                pl.BlockSpec((nb * L, F), xm_map),             # inputs_mid (flattened)
                pl.BlockSpec((Cin, F), const_map),             # conv  weight (Cin, F)
                pl.BlockSpec((1, F), const_map),               # conv  bias
                pl.BlockSpec((1, F), const_map),               # bn    gamma
                pl.BlockSpec((1, F), const_map),               # bn    beta
                pl.BlockSpec((F, F2), const_map),              # conv1 weight (F, 2F)
                pl.BlockSpec((1, F2), const_map),              # conv1 bias
            ],
            out_specs=(
                pl.BlockSpec((nb * L3, F2), h2_map),
                pl.BlockSpec((1, F2), const_map),
                pl.BlockSpec((1, F2), const_map),
            ),
            scratch_shapes=[
                pltpu.VMEM((1, F), jnp.float32),               # BN1 sum
                pltpu.VMEM((1, F), jnp.float32),               # BN1 sumsq
                pltpu.VMEM((1, F), jnp.float32),               # BN1 fused scale
                pltpu.VMEM((1, F), jnp.float32),               # BN1 fused shift
            ],
        ),
        compiler_params=pltpu.CompilerParams(
            # Phases must run in order and BN stats accumulate across the batch
            # groups, so both grid axes are 'arbitrary'.
            # TODO(synk): v7x two-TC split (per-core partial stats + CMEM reduce)
            #             not implemented; this runs on one TensorCore there.
            dimension_semantics=("arbitrary", "arbitrary"),
            # Conservative limit (safe on v7x's 64 MiB VMEM); raise together with
            # vmem_budget_bytes on v5e/v6e (128 MiB) for larger batch-group blocks.
            vmem_limit_bytes=32 * 1024 * 1024,
        ),
        cost_estimate=pl.CostEstimate(flops=flops, transcendentals=F,
                                      bytes_accessed=bytes_accessed),
    )(x_flat, xm_flat, w1, row(b1), row(g1), row(bt1), w2, row(b2))

    # BN2 finalize + affine: global stats only exist after the whole grid ran, so
    # the per-channel scale/shift is applied as a cheap XLA elementwise op here
    # (replaces the old phase-2 full x/xm re-read + matmul recompute).
    inv2 = 1.0 / (N * L3)
    mean2 = sum2 * inv2
    var2 = jnp.maximum(sq2 * inv2 - mean2 * mean2, 0.0)
    sc2 = row(g2).astype(jnp.float32) * lax.rsqrt(var2 + EPS)
    sh2 = row(bt2).astype(jnp.float32) - mean2 * sc2
    out = h2_flat.astype(jnp.float32) * sc2 + sh2
    return out.astype(x_nlc.dtype).reshape(N, L3, F2)


def ref_shortcut_pool(x_ncl, xm_ncl, params):
    """Pure-JAX reference in PyTorch NCL layout (training-mode BatchNorm)."""
    w1, b1, g1, bt1, w2, b2, g2, bt2 = params

    def conv1x1_s2(x, w, b):                  # k=1, stride=2, 'same' (no pad needed)
        y = jnp.einsum('ncl,cf->nfl', x[:, :, ::2], w)
        return y + b[None, :, None]

    def bn(h, g, bt):                         # training-mode BatchNorm1d, biased var
        mean = jnp.mean(h, axis=(0, 2), keepdims=True)
        var = jnp.mean((h - mean) ** 2, axis=(0, 2), keepdims=True)
        return (h - mean) / jnp.sqrt(var + EPS) * g[None, :, None] + bt[None, :, None]

    def maxpool3_s2_same(x):                  # Keras 'same': right pad with -inf
        _, _, L_ = x.shape
        xp = jnp.pad(x, ((0, 0), (0, 0), (0, 1)), constant_values=-jnp.inf)
        return jnp.maximum(jnp.maximum(xp[:, :, 0:L_:2], xp[:, :, 1:L_ + 1:2]),
                           xp[:, :, 2:L_ + 1:2])

    conv = bn(conv1x1_s2(x_ncl, w1, b1), g1, bt1)
    s = conv + maxpool3_s2_same(xm_ncl)
    return bn(conv1x1_s2(s, w2, b2), g2, bt2)


def init_params(key, in_channels, filter_num):
    f2 = 2 * filter_num
    ks = jax.random.split(key, 8)
    s1 = 1.0 / jnp.sqrt(float(in_channels))   # k=1 convs
    s2 = 1.0 / jnp.sqrt(float(filter_num))
    w1 = jax.random.uniform(ks[0], (in_channels, filter_num), jnp.float32, -s1, s1)
    b1 = jax.random.uniform(ks[1], (filter_num,), jnp.float32, -s1, s1)
    w2 = jax.random.uniform(ks[2], (filter_num, f2), jnp.float32, -s2, s2)
    b2 = jax.random.uniform(ks[3], (f2,), jnp.float32, -s2, s2)
    # BatchNorm affine params (perturbed from PyTorch defaults so the affine path
    # is actually exercised).
    g1 = 1.0 + 0.1 * jax.random.normal(ks[4], (filter_num,), jnp.float32)
    bt1 = 0.1 * jax.random.normal(ks[5], (filter_num,), jnp.float32)
    g2 = 1.0 + 0.1 * jax.random.normal(ks[6], (f2,), jnp.float32)
    bt2 = 0.1 * jax.random.normal(ks[7], (f2,), jnp.float32)
    return (w1, b1, g1, bt1, w2, b2, g2, bt2)


if __name__ == "__main__":
    key = jax.random.PRNGKey(0)
    kx, km, kp = jax.random.split(key, 3)

    N, C_IN, L, FILTER_NUM = 2, 64, 16, 128
    # PyTorch-layout tensors (N, C, L) for the reference; the kernel itself runs
    # channels-last (in a full VDCNN the layout change amortizes once at the model
    # boundary, so the transposes below live only in this test harness).
    x_ncl = jax.random.normal(kx, (N, C_IN, L), jnp.float32)          # inputs
    xm_ncl = jax.random.normal(km, (N, FILTER_NUM, L), jnp.float32)   # inputs_mid
    params = init_params(kp, C_IN, FILTER_NUM)

    fwd = jax.jit(shortcut_pool)
    out_nlc = jax.block_until_ready(
        fwd(jnp.transpose(x_ncl, (0, 2, 1)),
            jnp.transpose(xm_ncl, (0, 2, 1)), params))
    out_ncl = jnp.transpose(out_nlc, (0, 2, 1))

    ref = jax.block_until_ready(ref_shortcut_pool(x_ncl, xm_ncl, params))

    assert out_ncl.shape == (N, 2 * FILTER_NUM, L // 4), out_ncl.shape
    err = float(jnp.max(jnp.abs(out_ncl - ref)))
    assert jnp.allclose(out_ncl, ref, atol=2e-3, rtol=2e-3), err
    print("KERNEL_OK")
</pallas_src>

<mosaic_0001>
module attributes {stable_mosaic.version = 11 : i64} {
  func.func @_shortcut_pool_kernel(%arg0: i32, %arg1: i32, %arg2: memref<32x64xf32, #tpu.memory_space<vmem>>, %arg3: memref<32x128xf32, #tpu.memory_space<vmem>>, %arg4: memref<64x128xf32, #tpu.memory_space<vmem>>, %arg5: memref<1x128xf32, #tpu.memory_space<vmem>>, %arg6: memref<1x128xf32, #tpu.memory_space<vmem>>, %arg7: memref<1x128xf32, #tpu.memory_space<vmem>>, %arg8: memref<128x256xf32, #tpu.memory_space<vmem>>, %arg9: memref<1x256xf32, #tpu.memory_space<vmem>>, %arg10: memref<8x256xf32, #tpu.memory_space<vmem>>, %arg11: memref<1x256xf32, #tpu.memory_space<vmem>>, %arg12: memref<1x256xf32, #tpu.memory_space<vmem>>, %arg13: memref<1x128xf32, #tpu.memory_space<vmem>>, %arg14: memref<1x128xf32, #tpu.memory_space<vmem>>, %arg15: memref<1x128xf32, #tpu.memory_space<vmem>>, %arg16: memref<1x128xf32, #tpu.memory_space<vmem>>) attributes {dimension_semantics = [#tpu.dimension_semantics<arbitrary>, #tpu.dimension_semantics<arbitrary>], iteration_bounds = array<i64: 2, 1>, scalar_prefetch = 0 : i64, scratch_operands = 4 : i64, tpu.core_type = #tpu.core_type<tc>, window_params = [{transform_indices = @transform_0, window_bounds = array<i64: 32, 64>}, {transform_indices = @transform_1, window_bounds = array<i64: 32, 128>}, {pipeline_mode = #tpu.pipeline_mode<synchronous>, transform_indices = @transform_2, window_bounds = array<i64: 64, 128>}, {pipeline_mode = #tpu.pipeline_mode<synchronous>, transform_indices = @transform_3, window_bounds = array<i64: 1, 128>}, {pipeline_mode = #tpu.pipeline_mode<synchronous>, transform_indices = @transform_4, window_bounds = array<i64: 1, 128>}, {pipeline_mode = #tpu.pipeline_mode<synchronous>, transform_indices = @transform_5, window_bounds = array<i64: 1, 128>}, {pipeline_mode = #tpu.pipeline_mode<synchronous>, transform_indices = @transform_6, window_bounds = array<i64: 128, 256>}, {pipeline_mode = #tpu.pipeline_mode<synchronous>, transform_indices = @transform_7, window_bounds = array<i64: 1, 256>}, {transform_indices = @transform_8, window_bounds = array<i64: 8, 256>}, {pipeline_mode = #tpu.pipeline_mode<synchronous>, transform_indices = @transform_9, window_bounds = array<i64: 1, 256>}, {pipeline_mode = #tpu.pipeline_mode<synchronous>, transform_indices = @transform_10, window_bounds = array<i64: 1, 256>}]} {
    %c0_i32 = arith.constant 0 : i32
    %0 = arith.cmpi eq, %arg0, %c0_i32 : i32
    %c0_i32_0 = arith.constant 0 : i32
    %1 = arith.cmpi eq, %arg1, %c0_i32_0 : i32
    %2 = arith.andi %0, %1 : i1
    %3 = arith.extui %2 : i1 to i32
    %c0_i32_1 = arith.constant 0 : i32
    %4 = arith.cmpi ne, %3, %c0_i32_1 : i32
    scf.if %4 {
      %cst = arith.constant 0.000000e+00 : f32
      %16 = vector.broadcast %cst : f32 to vector<1x128xf32>
      %c0 = arith.constant 0 : index
      %c0_8 = arith.constant 0 : index
      %17 = vector.load %arg13[%c0, %c0_8] : memref<1x128xf32, #tpu.memory_space<vmem>>, vector<1x128xf32>
      tpu.vector_store %arg13[%c0, %c0_8], %16 {strides = array<i32>} : memref<1x128xf32, #tpu.memory_space<vmem>>, vector<1x128xf32>,
      %cst_9 = arith.constant 0.000000e+00 : f32
      %18 = vector.broadcast %cst_9 : f32 to vector<1x128xf32>
      %c0_10 = arith.constant 0 : index
      %c0_11 = arith.constant 0 : index
      %19 = vector.load %arg14[%c0_10, %c0_11] : memref<1x128xf32, #tpu.memory_space<vmem>>, vector<1x128xf32>
      tpu.vector_store %arg14[%c0_10, %c0_11], %18 {strides = array<i32>} : memref<1x128xf32, #tpu.memory_space<vmem>>, vector<1x128xf32>,
      %cst_12 = arith.constant 0.000000e+00 : f32
      %20 = vector.broadcast %cst_12 : f32 to vector<1x256xf32>
      %c0_13 = arith.constant 0 : index
      %c0_14 = arith.constant 0 : index
      %21 = vector.load %arg11[%c0_13, %c0_14] : memref<1x256xf32, #tpu.memory_space<vmem>>, vector<1x256xf32>
      tpu.vector_store %arg11[%c0_13, %c0_14], %20 {strides = array<i32>} : memref<1x256xf32, #tpu.memory_space<vmem>>, vector<1x256xf32>,
      %cst_15 = arith.constant 0.000000e+00 : f32
      %22 = vector.broadcast %cst_15 : f32 to vector<1x256xf32>
      %c0_16 = arith.constant 0 : index
      %c0_17 = arith.constant 0 : index
      %23 = vector.load %arg12[%c0_16, %c0_17] : memref<1x256xf32, #tpu.memory_space<vmem>>, vector<1x256xf32>
      tpu.vector_store %arg12[%c0_16, %c0_17], %22 {strides = array<i32>} : memref<1x256xf32, #tpu.memory_space<vmem>>, vector<1x256xf32>,
    } else {
    }
    %c0_i32_2 = arith.constant 0 : i32
    %5 = arith.cmpi eq, %arg0, %c0_i32_2 : i32
    %6 = arith.extui %5 : i1 to i32
    %c0_i32_3 = arith.constant 0 : i32
    %7 = arith.cmpi ne, %6, %c0_i32_3 : i32
    scf.if %7 {
      %c0 = arith.constant 0 : index
      %c0_8 = arith.constant 0 : index
      %16 = tpu.strided_load %arg2[%c0, %c0_8] {strides = array<i32: 2, 1>} : memref<32x64xf32, #tpu.memory_space<vmem>>, vector<16x64xf32>
      %c0_9 = arith.constant 0 : index
      %c0_10 = arith.constant 0 : index
      %17 = vector.load %arg4[%c0_9, %c0_10] : memref<64x128xf32, #tpu.memory_space<vmem>>, vector<64x128xf32>
      %cst = arith.constant dense<0.000000e+00> : vector<16x128xf32>
      %18 = tpu.matmul %16, %17, %cst {dimension_numbers = #tpu.dot_dimension_numbers<[1], [0], [0], [1], [0, 0, 1, 1], [], []>} : vector<16x64xf32>, vector<64x128xf32>, vector<16x128xf32> -> vector<16x128xf32>
      %c0_11 = arith.constant 0 : index
      %c0_12 = arith.constant 0 : index
      %19 = vector.load %arg5[%c0_11, %c0_12] : memref<1x128xf32, #tpu.memory_space<vmem>>, vector<1x128xf32>
      %20 = vector.broadcast %19 : vector<1x128xf32> to vector<16x128xf32>
      %21 = arith.addf %18, %20 : vector<16x128xf32>
      %c0_13 = arith.constant 0 : index
      %c0_14 = arith.constant 0 : index
      %22 = vector.load %arg13[%c0_13, %c0_14] : memref<1x128xf32, #tpu.memory_space<vmem>>, vector<1x128xf32>
      %cst_15 = arith.constant dense<0.000000e+00> : vector<128xf32>
      %23 = vector.multi_reduction <add>, %21, %cst_15 [0] : vector<16x128xf32> to vector<128xf32>
      %24 = vector.shape_cast %23 : vector<128xf32> to vector<1x128xf32>
      %25 = arith.addf %22, %24 : vector<1x128xf32>
      %c0_16 = arith.constant 0 : index
      %c0_17 = arith.constant 0 : index
      %26 = vector.load %arg13[%c0_16, %c0_17] : memref<1x128xf32, #tpu.memory_space<vmem>>, vector<1x128xf32>
      tpu.vector_store %arg13[%c0_16, %c0_17], %25 {strides = array<i32>} : memref<1x128xf32, #tpu.memory_space<vmem>>, vector<1x128xf32>,
      %c0_18 = arith.constant 0 : index
      %c0_19 = arith.constant 0 : index
      %27 = vector.load %arg14[%c0_18, %c0_19] : memref<1x128xf32, #tpu.memory_space<vmem>>, vector<1x128xf32>
      %28 = arith.mulf %21, %21 : vector<16x128xf32>
      %cst_20 = arith.constant dense<0.000000e+00> : vector<128xf32>
      %29 = vector.multi_reduction <add>, %28, %cst_20 [0] : vector<16x128xf32> to vector<128xf32>
      %30 = vector.shape_cast %29 : vector<128xf32> to vector<1x128xf32>
      %31 = arith.addf %27, %30 : vector<1x128xf32>
      %c0_21 = arith.constant 0 : index
      %c0_22 = arith.constant 0 : index
      %32 = vector.load %arg14[%c0_21, %c0_22] : memref<1x128xf32, #tpu.memory_space<vmem>>, vector<1x128xf32>
      tpu.vector_store %arg14[%c0_21, %c0_22], %31 {strides = array<i32>} : memref<1x128xf32, #tpu.memory_space<vmem>>, vector<1x128xf32>,
    } else {
    }
    %c1_i32 = arith.constant 1 : i32
    %8 = arith.cmpi eq, %arg0, %c1_i32 : i32
    %c0_i32_4 = arith.constant 0 : i32
    %9 = arith.cmpi eq, %arg1, %c0_i32_4 : i32
    %10 = arith.andi %8, %9 : i1
    %11 = arith.extui %10 : i1 to i32
    %c0_i32_5 = arith.constant 0 : i32
    %12 = arith.cmpi ne, %11, %c0_i32_5 : i32
    scf.if %12 {
      %c0 = arith.constant 0 : index
      %c0_8 = arith.constant 0 : index
      %16 = vector.load %arg13[%c0, %c0_8] : memref<1x128xf32, #tpu.memory_space<vmem>>, vector<1x128xf32>
      %cst = arith.constant 6.250000e-02 : f32
      %17 = vector.broadcast %cst : f32 to vector<1x128xf32>
      %18 = arith.mulf %16, %17 : vector<1x128xf32>
      %c0_9 = arith.constant 0 : index
      %c0_10 = arith.constant 0 : index
      %19 = vector.load %arg14[%c0_9, %c0_10] : memref<1x128xf32, #tpu.memory_space<vmem>>, vector<1x128xf32>
      %cst_11 = arith.constant 6.250000e-02 : f32
      %20 = vector.broadcast %cst_11 : f32 to vector<1x128xf32>
      %21 = arith.mulf %19, %20 : vector<1x128xf32>
      %22 = arith.mulf %18, %18 : vector<1x128xf32>
      %23 = arith.subf %21, %22 : vector<1x128xf32>
      %cst_12 = arith.constant 0.000000e+00 : f32
      %24 = vector.broadcast %cst_12 : f32 to vector<1x128xf32>
      %25 = arith.maximumf %23, %24 : vector<1x128xf32>
      %c0_13 = arith.constant 0 : index
      %c0_14 = arith.constant 0 : index
      %26 = vector.load %arg6[%c0_13, %c0_14] : memref<1x128xf32, #tpu.memory_space<vmem>>, vector<1x128xf32>
      %cst_15 = arith.constant 9.99999974E-6 : f32
      %27 = vector.broadcast %cst_15 : f32 to vector<1x128xf32>
      %28 = arith.addf %25, %27 : vector<1x128xf32>
      %29 = math.rsqrt %28 : vector<1x128xf32>
      %30 = arith.mulf %26, %29 : vector<1x128xf32>
      %c0_16 = arith.constant 0 : index
      %c0_17 = arith.constant 0 : index
      %31 = vector.load %arg15[%c0_16, %c0_17] : memref<1x128xf32, #tpu.memory_space<vmem>>, vector<1x128xf32>
      tpu.vector_store %arg15[%c0_16, %c0_17], %30 {strides = array<i32>} : memref<1x128xf32, #tpu.memory_space<vmem>>, vector<1x128xf32>,
      %c0_18 = arith.constant 0 : index
      %c0_19 = arith.constant 0 : index
      %32 = vector.load %arg7[%c0_18, %c0_19] : memref<1x128xf32, #tpu.memory_space<vmem>>, vector<1x128xf32>
      %c0_20 = arith.constant 0 : index
      %c0_21 = arith.constant 0 : index
      %33 = vector.load %arg15[%c0_20, %c0_21] : memref<1x128xf32, #tpu.memory_space<vmem>>, vector<1x128xf32>
      %34 = arith.mulf %18, %33 : vector<1x128xf32>
      %35 = arith.subf %32, %34 : vector<1x128xf32>
      %c0_22 = arith.constant 0 : index
      %c0_23 = arith.constant 0 : index
      %36 = vector.load %arg16[%c0_22, %c0_23] : memref<1x128xf32, #tpu.memory_space<vmem>>, vector<1x128xf32>
      tpu.vector_store %arg16[%c0_22, %c0_23], %35 {strides = array<i32>} : memref<1x128xf32, #tpu.memory_space<vmem>>, vector<1x128xf32>,
    } else {
    }
    %c1_i32_6 = arith.constant 1 : i32
    %13 = arith.cmpi eq, %arg0, %c1_i32_6 : i32
    %14 = arith.extui %13 : i1 to i32
    %c0_i32_7 = arith.constant 0 : i32
    %15 = arith.cmpi ne, %14, %c0_i32_7 : i32
    scf.if %15 {
      %c0 = arith.constant 0 : index
      %c0_8 = arith.constant 0 : index
      %16 = tpu.strided_load %arg2[%c0, %c0_8] {strides = array<i32: 4, 1>} : memref<32x64xf32, #tpu.memory_space<vmem>>, vector<8x64xf32>
      %c0_9 = arith.constant 0 : index
      %c0_10 = arith.constant 0 : index
      %17 = vector.load %arg4[%c0_9, %c0_10] : memref<64x128xf32, #tpu.memory_space<vmem>>, vector<64x128xf32>
      %cst = arith.constant dense<0.000000e+00> : vector<8x128xf32>
      %18 = tpu.matmul %16, %17, %cst {dimension_numbers = #tpu.dot_dimension_numbers<[1], [0], [0], [1], [0, 0, 1, 1], [], []>} : vector<8x64xf32>, vector<64x128xf32>, vector<8x128xf32> -> vector<8x128xf32>
      %c0_11 = arith.constant 0 : index
      %c0_12 = arith.constant 0 : index
      %19 = vector.load %arg5[%c0_11, %c0_12] : memref<1x128xf32, #tpu.memory_space<vmem>>, vector<1x128xf32>
      %20 = vector.broadcast %19 : vector<1x128xf32> to vector<8x128xf32>
      %21 = arith.addf %18, %20 : vector<8x128xf32>
      %c0_13 = arith.constant 0 : index
      %c0_14 = arith.constant 0 : index
      %22 = tpu.strided_load %arg3[%c0_13, %c0_14] {strides = array<i32: 4, 1>} : memref<32x128xf32, #tpu.memory_space<vmem>>, vector<8x128xf32>
      %c1 = arith.constant 1 : index
      %c0_15 = arith.constant 0 : index
      %23 = tpu.strided_load %arg3[%c1, %c0_15] {strides = array<i32: 4, 1>} : memref<32x128xf32, #tpu.memory_space<vmem>>, vector<8x128xf32>
      %c2 = arith.constant 2 : index
      %c0_16 = arith.constant 0 : index
      %24 = tpu.strided_load %arg3[%c2, %c0_16] {strides = array<i32: 4, 1>} : memref<32x128xf32, #tpu.memory_space<vmem>>, vector<8x128xf32>
      %25 = arith.maximumf %22, %23 : vector<8x128xf32>
      %26 = arith.maximumf %25, %24 : vector<8x128xf32>
      %c0_17 = arith.constant 0 : index
      %c0_18 = arith.constant 0 : index
      %27 = vector.load %arg15[%c0_17, %c0_18] : memref<1x128xf32, #tpu.memory_space<vmem>>, vector<1x128xf32>
      %28 = vector.broadcast %27 : vector<1x128xf32> to vector<8x128xf32>
      %29 = arith.mulf %21, %28 : vector<8x128xf32>
      %c0_19 = arith.constant 0 : index
      %c0_20 = arith.constant 0 : index
      %30 = vector.load %arg16[%c0_19, %c0_20] : memref<1x128xf32, #tpu.memory_space<vmem>>, vector<1x128xf32>
      %31 = vector.broadcast %30 : vector<1x128xf32> to vector<8x128xf32>
      %32 = arith.addf %29, %31 : vector<8x128xf32>
      %33 = arith.addf %32, %26 : vector<8x128xf32>
      %c0_21 = arith.constant 0 : index
      %c0_22 = arith.constant 0 : index
      %34 = vector.load %arg8[%c0_21, %c0_22] : memref<128x256xf32, #tpu.memory_space<vmem>>, vector<128x256xf32>
      %cst_23 = arith.constant dense<0.000000e+00> : vector<8x256xf32>
      %35 = tpu.matmul %33, %34, %cst_23 {dimension_numbers = #tpu.dot_dimension_numbers<[1], [0], [0], [1], [0, 0, 1, 1], [], []>} : vector<8x128xf32>, vector<128x256xf32>, vector<8x256xf32> -> vector<8x256xf32>
      %c0_24 = arith.constant 0 : index
      %c0_25 = arith.constant 0 : index
      %36 = vector.load %arg9[%c0_24, %c0_25] : memref<1x256xf32, #tpu.memory_space<vmem>>, vector<1x256xf32>
      %37 = vector.broadcast %36 : vector<1x256xf32> to vector<8x256xf32>
      %38 = arith.addf %35, %37 : vector<8x256xf32>
      %c0_26 = arith.constant 0 : index
      %c0_27 = arith.constant 0 : index
      %39 = vector.load %arg10[%c0_26, %c0_27] : memref<8x256xf32, #tpu.memory_space<vmem>>, vector<8x256xf32>
      tpu.vector_store %arg10[%c0_26, %c0_27], %38 {strides = array<i32>} : memref<8x256xf32, #tpu.memory_space<vmem>>, vector<8x256xf32>,
      %c0_28 = arith.constant 0 : index
      %c0_29 = arith.constant 0 : index
      %40 = vector.load %arg11[%c0_28, %c0_29] : memref<1x256xf32, #tpu.memory_space<vmem>>, vector<1x256xf32>
      %cst_30 = arith.constant dense<0.000000e+00> : vector<256xf32>
      %41 = vector.multi_reduction <add>, %38, %cst_30 [0] : vector<8x256xf32> to vector<256xf32>
      %42 = vector.shape_cast %41 : vector<256xf32> to vector<1x256xf32>
      %43 = arith.addf %40, %42 : vector<1x256xf32>
      %c0_31 = arith.constant 0 : index
      %c0_32 = arith.constant 0 : index
      %44 = vector.load %arg11[%c0_31, %c0_32] : memref<1x256xf32, #tpu.memory_space<vmem>>, vector<1x256xf32>
      tpu.vector_store %arg11[%c0_31, %c0_32], %43 {strides = array<i32>} : memref<1x256xf32, #tpu.memory_space<vmem>>, vector<1x256xf32>,
      %c0_33 = arith.constant 0 : index
      %c0_34 = arith.constant 0 : index
      %45 = vector.load %arg12[%c0_33, %c0_34] : memref<1x256xf32, #tpu.memory_space<vmem>>, vector<1x256xf32>
      %46 = arith.mulf %38, %38 : vector<8x256xf32>
      %cst_35 = arith.constant dense<0.000000e+00> : vector<256xf32>
      %47 = vector.multi_reduction <add>, %46, %cst_35 [0] : vector<8x256xf32> to vector<256xf32>
      %48 = vector.shape_cast %47 : vector<256xf32> to vector<1x256xf32>
      %49 = arith.addf %45, %48 : vector<1x256xf32>
      %c0_36 = arith.constant 0 : index
      %c0_37 = arith.constant 0 : index
      %50 = vector.load %arg12[%c0_36, %c0_37] : memref<1x256xf32, #tpu.memory_space<vmem>>, vector<1x256xf32>
      tpu.vector_store %arg12[%c0_36, %c0_37], %49 {strides = array<i32>} : memref<1x256xf32, #tpu.memory_space<vmem>>, vector<1x256xf32>,
    } else {
    }
    return
  }
  func.func @transform_0(%arg0: i32, %arg1: i32) -> (i32, i32) {
    %c0_i32 = arith.constant 0 : i32
    %c0_i32_0 = arith.constant 0 : i32
    return %arg1, %c0_i32 : i32, i32
  }
  func.func @transform_1(%arg0: i32, %arg1: i32) -> (i32, i32) {
    %c1_i32 = arith.constant 1 : i32
    %0 = arith.cmpi eq, %arg0, %c1_i32 : i32
    %c0_i32 = arith.constant 0 : i32
    %1 = arith.select %0, %arg1, %c0_i32 : i32
    %c0_i32_0 = arith.constant 0 : i32
    %c0_i32_1 = arith.constant 0 : i32
    return %1, %c0_i32_0 : i32, i32
  }
  func.func @transform_2(%arg0: i32, %arg1: i32) -> (i32, i32) {
    %c0_i32 = arith.constant 0 : i32
    %c0_i32_0 = arith.constant 0 : i32
    %c0_i32_1 = arith.constant 0 : i32
    return %c0_i32, %c0_i32_0 : i32, i32
  }
  func.func @transform_3(%arg0: i32, %arg1: i32) -> (i32, i32) {
    %c0_i32 = arith.constant 0 : i32
    %c0_i32_0 = arith.constant 0 : i32
    %c0_i32_1 = arith.constant 0 : i32
    return %c0_i32, %c0_i32_0 : i32, i32
  }
  func.func @transform_4(%arg0: i32, %arg1: i32) -> (i32, i32) {
    %c0_i32 = arith.constant 0 : i32
    %c0_i32_0 = arith.constant 0 : i32
    %c0_i32_1 = arith.constant 0 : i32
    return %c0_i32, %c0_i32_0 : i32, i32
  }
  func.func @transform_5(%arg0: i32, %arg1: i32) -> (i32, i32) {
    %c0_i32 = arith.constant 0 : i32
    %c0_i32_0 = arith.constant 0 : i32
    %c0_i32_1 = arith.constant 0 : i32
    return %c0_i32, %c0_i32_0 : i32, i32
  }
  func.func @transform_6(%arg0: i32, %arg1: i32) -> (i32, i32) {
    %c0_i32 = arith.constant 0 : i32
    %c0_i32_0 = arith.constant 0 : i32
    %c0_i32_1 = arith.constant 0 : i32
    return %c0_i32, %c0_i32_0 : i32, i32
  }
  func.func @transform_7(%arg0: i32, %arg1: i32) -> (i32, i32) {
    %c0_i32 = arith.constant 0 : i32
    %c0_i32_0 = arith.constant 0 : i32
    %c0_i32_1 = arith.constant 0 : i32
    return %c0_i32, %c0_i32_0 : i32, i32
  }
  func.func @transform_8(%arg0: i32, %arg1: i32) -> (i32, i32) {
    %c1_i32 = arith.constant 1 : i32
    %0 = arith.cmpi eq, %arg0, %c1_i32 : i32
    %c0_i32 = arith.constant 0 : i32
    %1 = arith.select %0, %arg1, %c0_i32 : i32
    %c0_i32_0 = arith.constant 0 : i32
    %c0_i32_1 = arith.constant 0 : i32
    return %1, %c0_i32_0 : i32, i32
  }
  func.func @transform_9(%arg0: i32, %arg1: i32) -> (i32, i32) {
    %c0_i32 = arith.constant 0 : i32
    %c0_i32_0 = arith.constant 0 : i32
    %c0_i32_1 = arith.constant 0 : i32
    return %c0_i32, %c0_i32_0 : i32, i32
  }
  func.func @transform_10(%arg0: i32, %arg1: i32) -> (i32, i32) {
    %c0_i32 = arith.constant 0 : i32
    %c0_i32_0 = arith.constant 0 : i32
    %c0_i32_1 = arith.constant 0 : i32
    return %c0_i32, %c0_i32_0 : i32, i32
  }
}

</mosaic_0001>

<llo_original>
// kernel: shortcut_pool.1
$region0: #{shortcut_pool.1}
  #allocation0 [shape = 'u32[]', space=smem, size = 0x4, offset = 0x4, fixed_abs, tag = 'smem constant byte address 0x4 - core index']
  #allocation1 [shape = 'u32[144,128]{1,0:T(1,128)}', space=vmem, size = 0x12000, scoped, tag = 'internal scratch']
  #allocation2 [shape = 'f32[1,128]{1,0:T(1,128)}', space=vmem, size = 0x200, scoped, tag = 'scratch operand']
  #allocation3 [shape = 'f32[1,128]{1,0:T(1,128)}', space=vmem, size = 0x200, scoped, tag = 'scratch operand']
  #allocation4 [shape = 'f32[1,128]{1,0:T(1,128)}', space=vmem, size = 0x200, scoped, tag = 'scratch operand']
  #allocation5 [shape = 'f32[1,128]{1,0:T(1,128)}', space=vmem, size = 0x200, scoped, tag = 'scratch operand']
  %s0 = inlined_call_operand.hbm [shape: f32[32,64], index: 0, kind: input, shape index: {}]
  %s1 = inlined_call_operand.vmem [shape: f32[32,128], index: 1, kind: input, shape index: {}]
  %s2 = inlined_call_operand.hbm [shape: f32[64,128], index: 2, kind: input, shape index: {}]
  %s3 = inlined_call_operand.vmem [shape: f32[1,128], index: 3, kind: input, shape index: {}]
  %s4 = inlined_call_operand.vmem [shape: f32[1,128], index: 4, kind: input, shape index: {}]
  %s5 = inlined_call_operand.vmem [shape: f32[1,128], index: 5, kind: input, shape index: {}]
  %s6 = inlined_call_operand.hbm [shape: f32[128,256], index: 6, kind: input, shape index: {}]
  %s7 = inlined_call_operand.vmem [shape: f32[1,256], index: 7, kind: input, shape index: {}]
  %s8 = inlined_call_operand.vmem [shape: f32[8,256], index: 8, kind: output, shape index: {0}]
  %s9 = inlined_call_operand.vmem [shape: f32[1,256], index: 9, kind: output, shape index: {1}]
  %s10 = inlined_call_operand.vmem [shape: f32[1,256], index: 10, kind: output, shape index: {2}]
  %11 = xla_tuple %s8, %s9, %s10
  %s12 = sld [smem:[#allocation0]]
  $region109: #{shortcut_pool.1} parent=0
    _
  %s14 = ssub.s32 1, %s12
  %s15 = scalar_select 0, %s14, %s12
  $region1: #{shortcut_pool.1} parent=0
    #allocation6 [shape = 'u8[16384]{0}', space=vmem, size = 0x4000, scoped, tag = 'input window, operand 0, single buffered']
    #allocation7 [shape = 's32[2]{0}', space=sflag, size = 0x8, scoped, tag = 'scoped memory for shortcut_pool.1']
    #allocation8 [shape = 'u8[32768]{0}', space=vmem, size = 0x8000, scoped, tag = 'input window, operand 2, single buffered']
    #allocation9 [shape = 's32[1]{0}', space=sflag, size = 0x4, scoped, tag = 'scoped memory for shortcut_pool.1']
    #allocation10 [shape = 'u8[131072]{0}', space=vmem, size = 0x20000, scoped, tag = 'input window, operand 6, single buffered']
    %16 = vsyncpa [#allocation7], 0
    %17 = vsyncpa [#allocation9], 0
    loop: start=0, step=1, limit=4
    $region2: #{shortcut_pool.1} parent=1 // loop_pre_header
      _
    $region3: #{shortcut_pool.1} parent=1 // loop_header
      %s19 = sphi 0, %s23
      %p20 = scmp.ge.s32.totalorder %s19, 4
      %s26 = sphi 0, %s38
      %s27 = sphi 0, %s34
      %s28 = sphi 0, %s26
      %s29 = sphi 0, %s27
      %s30 = sphi 0, %s28
      %s31 = sphi 0, %s29
      %s41 = sphi 0, %s43
      %s44 = sphi 0, %s41
      %s45 = sphi 0, %s44
      %s61 = sphi 0, %s45
      %s71 = sphi 0, %s73
      %s74 = sphi 0, %s71
      %s75 = sphi 0, %s74
      %s91 = sphi 0, %s75
      %s95 = sphi 0, %s95
      %s97 = sphi 0, %s95
      %s98 = sphi 0, %s97
      %s112 = sphi 0, %s98
      %s116 = sphi 0, %s116
      %s118 = sphi 0, %s116
      %s119 = sphi 0, %s118
      %s133 = sphi 0, %s119
      %s137 = sphi 0, %s137
      %s139 = sphi 0, %s137
      %s140 = sphi 0, %s139
      %s154 = sphi 0, %s140
      %s158 = sphi 0, %s158
      %s160 = sphi 0, %s158
      %s161 = sphi 0, %s160
      %s175 = sphi 0, %s161
      %s179 = sphi 0, %s179
      %s181 = sphi 0, %s179
      %s182 = sphi 0, %s181
      %s196 = sphi 0, %s182
      %s200 = sphi 0, %s200
      %s202 = sphi 0, %s200
      %s203 = sphi 0, %s202
      %s217 = sphi 0, %s203
      %s227 = sphi 0, %s229
      %s230 = sphi 0, %s227
      %s231 = sphi 0, %s230
      %s247 = sphi 0, %s231
      %s251 = sphi 0, %s251
      %s253 = sphi 0, %s251
      %s254 = sphi 0, %s253
      %s268 = sphi 0, %s254
      %s272 = sphi 0, %s272
      %s274 = sphi 0, %s272
      %s275 = sphi 0, %s274
      %s289 = sphi 0, %s275
    $region4: #{shortcut_pool.1} parent=1 // loop_header_branch
      %22 = sbr.rel (%p20) target = $region8
    $region5: #{shortcut_pool.1} parent=1 // loop_body
      %s24 = ssub.s32 %s19, 1
      %s25 = ssub.s32 %s19, 2
      %s32 = sadd.s32 1, %s27
      %p33 = scmp.ge.s32.totalorder %s32, 1
      %s34 = scalar_select %p33, 0, %s32
      %s35 = sadd.s32 1, %s26
      %s36 = scalar_select %p33, %s35, %s26
      %p37 = scmp.ge.s32.totalorder %s36, 2
      %s38 = scalar_select %p37, 0, %s36
      %s39 = ssub.s32 %s27, %s34
      %p40 = scmp.eq.s32.totalorder %s39, 0
      %s42 = sadd.s32 %s41, 1
      %s43 = scalar_select %p40, %s41, %s42
      %p46 = pneg %p40
      %p47 = scmp.eq.s32.totalorder %s19, 1
      %p48 = por %p46, %p47
      %p49 = scmp.ne.s32.totalorder %s41, %s44
      %p50 = scmp.eq.s32.totalorder %s19, 0
      %p51 = por %p49, %p50
      %p52 = scmp.ne.s32.totalorder %s41, %s44
      %p53 = scmp.eq.s32.totalorder %s24, 1
      %p54 = por %p52, %p53
      %p55 = scmp.ne.s32.totalorder %s44, %s45
      %p56 = scmp.eq.s32.totalorder %s24, 0
      %p57 = por %p55, %p56
      %p58 = scmp.ne.s32.totalorder %s44, %s45
      %p59 = scmp.eq.s32.totalorder %s25, 1
      %p60 = por %p58, %p59
      %p62 = scmp.ne.s32.totalorder %s45, %s61
      %p63 = scmp.eq.s32.totalorder %s25, 0
      %p64 = por %p62, %p63
      %p65 = scmp.eq.s32.totalorder %s26, 1
      %s66 = scalar_select %p65, %s27, 0
      %p67 = scmp.eq.s32.totalorder %s38, 1
      %s68 = scalar_select %p67, %s34, 0
      %s69 = ssub.s32 %s66, %s68
      %p70 = scmp.eq.s32.totalorder %s69, 0
      %s72 = sadd.s32 %s71, 1
      %s73 = scalar_select %p70, %s71, %s72
      %p76 = pneg %p70
      %p77 = scmp.eq.s32.totalorder %s19, 1
      %p78 = por %p76, %p77
      %p79 = scmp.ne.s32.totalorder %s71, %s74
      %p80 = scmp.eq.s32.totalorder %s19, 0
      %p81 = por %p79, %p80
      %p82 = scmp.ne.s32.totalorder %s71, %s74
      %p83 = scmp.eq.s32.totalorder %s24, 1
      %p84 = por %p82, %p83
      %p85 = scmp.ne.s32.totalorder %s74, %s75
      %p86 = scmp.eq.s32.totalorder %s24, 0
      %p87 = por %p85, %p86
      %p88 = scmp.ne.s32.totalorder %s74, %s75
      %p89 = scmp.eq.s32.totalorder %s25, 1
      %p90 = por %p88, %p89
      %p92 = scmp.ne.s32.totalorder %s75, %s91
      %p93 = scmp.eq.s32.totalorder %s25, 0
      %p94 = por %p92, %p93
      %s96 = sadd.s32 %s95, 1
      %p99 = scmp.eq.s32.totalorder %s19, 1
      %p100 = scmp.ne.s32.totalorder %s95, %s97
      %p101 = scmp.eq.s32.totalorder %s19, 0
      %p102 = por %p100, %p101
      %p103 = scmp.ne.s32.totalorder %s95, %s97
      %p104 = scmp.eq.s32.totalorder %s24, 1
      %p105 = por %p103, %p104
      %p106 = scmp.ne.s32.totalorder %s97, %s98
      %p107 = scmp.eq.s32.totalorder %s24, 0
      %p108 = por %p106, %p107
      %p109 = scmp.ne.s32.totalorder %s97, %s98
      %p110 = scmp.eq.s32.totalorder %s25, 1
      %p111 = por %p109, %p110
      %p113 = scmp.ne.s32.totalorder %s98, %s112
      %p114 = scmp.eq.s32.totalorder %s25, 0
      %p115 = por %p113, %p114
      %s117 = sadd.s32 %s116, 1
      %p120 = scmp.eq.s32.totalorder %s19, 1
      %p121 = scmp.ne.s32.totalorder %s116, %s118
      %p122 = scmp.eq.s32.totalorder %s19, 0
      %p123 = por %p121, %p122
      %p124 = scmp.ne.s32.totalorder %s116, %s118
      %p125 = scmp.eq.s32.totalorder %s24, 1
      %p126 = por %p124, %p125
      %p127 = scmp.ne.s32.totalorder %s118, %s119
      %p128 = scmp.eq.s32.totalorder %s24, 0
      %p129 = por %p127, %p128
      %p130 = scmp.ne.s32.totalorder %s118, %s119
      %p131 = scmp.eq.s32.totalorder %s25, 1
      %p132 = por %p130, %p131
      %p134 = scmp.ne.s32.totalorder %s119, %s133
      %p135 = scmp.eq.s32.totalorder %s25, 0
      %p136 = por %p134, %p135
      %s138 = sadd.s32 %s137, 1
      %p141 = scmp.eq.s32.totalorder %s19, 1
      %p142 = scmp.ne.s32.totalorder %s137, %s139
      %p143 = scmp.eq.s32.totalorder %s19, 0
      %p144 = por %p142, %p143
      %p145 = scmp.ne.s32.totalorder %s137, %s139
      %p146 = scmp.eq.s32.totalorder %s24, 1
      %p147 = por %p145, %p146
      %p148 = scmp.ne.s32.totalorder %s139, %s140
      %p149 = scmp.eq.s32.totalorder %s24, 0
      %p150 = por %p148, %p149
      %p151 = scmp.ne.s32.totalorder %s139, %s140
      %p152 = scmp.eq.s32.totalorder %s25, 1
      %p153 = por %p151, %p152
      %p155 = scmp.ne.s32.totalorder %s140, %s154
      %p156 = scmp.eq.s32.totalorder %s25, 0
      %p157 = por %p155, %p156
      %s159 = sadd.s32 %s158, 1
      %p162 = scmp.eq.s32.totalorder %s19, 1
      %p163 = scmp.ne.s32.totalorder %s158, %s160
      %p164 = scmp.eq.s32.totalorder %s19, 0
      %p165 = por %p163, %p164
      %p166 = scmp.ne.s32.totalorder %s158, %s160
      %p167 = scmp.eq.s32.totalorder %s24, 1
      %p168 = por %p166, %p167
      %p169 = scmp.ne.s32.totalorder %s160, %s161
      %p170 = scmp.eq.s32.totalorder %s24, 0
      %p171 = por %p169, %p170
      %p172 = scmp.ne.s32.totalorder %s160, %s161
      %p173 = scmp.eq.s32.totalorder %s25, 1
      %p174 = por %p172, %p173
      %p176 = scmp.ne.s32.totalorder %s161, %s175
      %p177 = scmp.eq.s32.totalorder %s25, 0
      %p178 = por %p176, %p177
      %s180 = sadd.s32 %s179, 1
      %p183 = scmp.eq.s32.totalorder %s19, 1
      %p184 = scmp.ne.s32.totalorder %s179, %s181
      %p185 = scmp.eq.s32.totalorder %s19, 0
      %p186 = por %p184, %p185
      %p187 = scmp.ne.s32.totalorder %s179, %s181
      %p188 = scmp.eq.s32.totalorder %s24, 1
      %p189 = por %p187, %p188
      %p190 = scmp.ne.s32.totalorder %s181, %s182
      %p191 = scmp.eq.s32.totalorder %s24, 0
      %p192 = por %p190, %p191
      %p193 = scmp.ne.s32.totalorder %s181, %s182
      %p194 = scmp.eq.s32.totalorder %s25, 1
      %p195 = por %p193, %p194
      %p197 = scmp.ne.s32.totalorder %s182, %s196
      %p198 = scmp.eq.s32.totalorder %s25, 0
      %p199 = por %p197, %p198
      %s201 = sadd.s32 %s200, 1
      %p204 = scmp.eq.s32.totalorder %s19, 1
      %p205 = scmp.ne.s32.totalorder %s200, %s202
      %p206 = scmp.eq.s32.totalorder %s19, 0
      %p207 = por %p205, %p206
      %p208 = scmp.ne.s32.totalorder %s200, %s202
      %p209 = scmp.eq.s32.totalorder %s24, 1
      %p210 = por %p208, %p209
      %p211 = scmp.ne.s32.totalorder %s202, %s203
      %p212 = scmp.eq.s32.totalorder %s24, 0
      %p213 = por %p211, %p212
      %p214 = scmp.ne.s32.totalorder %s202, %s203
      %p215 = scmp.eq.s32.totalorder %s25, 1
      %p216 = por %p214, %p215
      %p218 = scmp.ne.s32.totalorder %s203, %s217
      %p219 = scmp.eq.s32.totalorder %s25, 0
      %p220 = por %p218, %p219
      %p221 = scmp.eq.s32.totalorder %s26, 1
      %s222 = scalar_select %p221, %s27, 0
      %p223 = scmp.eq.s32.totalorder %s38, 1
      %s224 = scalar_select %p223, %s34, 0
      %s225 = ssub.s32 %s222, %s224
      %p226 = scmp.eq.s32.totalorder %s225, 0
      %s228 = sadd.s32 %s227, 1
      %s229 = scalar_select %p226, %s227, %s228
      %p232 = pneg %p226
      %p233 = scmp.eq.s32.totalorder %s19, 1
      %p234 = por %p232, %p233
      %p235 = scmp.ne.s32.totalorder %s227, %s230
      %p236 = scmp.eq.s32.totalorder %s19, 0
      %p237 = por %p235, %p236
      %p238 = scmp.ne.s32.totalorder %s227, %s230
      %p239 = scmp.eq.s32.totalorder %s24, 1
      %p240 = por %p238, %p239
      %p241 = scmp.ne.s32.totalorder %s230, %s231
      %p242 = scmp.eq.s32.totalorder %s24, 0
      %p243 = por %p241, %p242
      %p244 = scmp.ne.s32.totalorder %s230, %s231
      %p245 = scmp.eq.s32.totalorder %s25, 1
      %p246 = por %p244, %p245
      %p248 = scmp.ne.s32.totalorder %s231, %s247
      %p249 = scmp.eq.s32.totalorder %s25, 0
      %p250 = por %p248, %p249
      %s252 = sadd.s32 %s251, 1
      %p255 = scmp.eq.s32.totalorder %s19, 1
      %p256 = scmp.ne.s32.totalorder %s251, %s253
      %p257 = scmp.eq.s32.totalorder %s19, 0
      %p258 = por %p256, %p257
      %p259 = scmp.ne.s32.totalorder %s251, %s253
      %p260 = scmp.eq.s32.totalorder %s24, 1
      %p261 = por %p259, %p260
      %p262 = scmp.ne.s32.totalorder %s253, %s254
      %p263 = scmp.eq.s32.totalorder %s24, 0
      %p264 = por %p262, %p263
      %p265 = scmp.ne.s32.totalorder %s253, %s254
      %p266 = scmp.eq.s32.totalorder %s25, 1
      %p267 = por %p265, %p266
      %p269 = scmp.ne.s32.totalorder %s254, %s268
      %p270 = scmp.eq.s32.totalorder %s25, 0
      %p271 = por %p269, %p270
      %s273 = sadd.s32 %s272, 1
      %p276 = scmp.eq.s32.totalorder %s19, 1
      %p277 = scmp.ne.s32.totalorder %s272, %s274
      %p278 = scmp.eq.s32.totalorder %s19, 0
      %p279 = por %p277, %p278
      %p280 = scmp.ne.s32.totalorder %s272, %s274
      %p281 = scmp.eq.s32.totalorder %s24, 1
      %p282 = por %p280, %p281
      %p283 = scmp.ne.s32.totalorder %s274, %s275
      %p284 = scmp.eq.s32.totalorder %s24, 0
      %p285 = por %p283, %p284
      %p286 = scmp.ne.s32.totalorder %s274, %s275
      %p287 = scmp.eq.s32.totalorder %s25, 1
      %p288 = por %p286, %p287
      %p290 = scmp.ne.s32.totalorder %s275, %s289
      %p291 = scmp.eq.s32.totalorder %s25, 0
      %p292 = por %p290, %p291
      %p293 = scmp.le.s32.totalorder 1, %s19
      %p294 = scmp.lt.s32.totalorder %s19, 3
      %p295 = pnand %p293, %p294
      %p296 = pneg %p295
      // Predicated region
      $region9: #{shortcut_pool.1} parent=5 // pred_check
        _
      $region10: #{shortcut_pool.1} parent=5 // pred_check_branch
        %298 = sbr.rel (%p295) target = $region12
      $region11: #{shortcut_pool.1} parent=5 // pred_region
        %s299 = ssub.s32 %s19, 1
        // Predicated region
        $region13: #{shortcut_pool.1} parent=11 // pred_check
          %p300 = pneg %p57
        $region14: #{shortcut_pool.1} parent=11 // pred_check_branch
          %302 = sbr.rel (%p300) target = $region16
        $region15: #{shortcut_pool.1} parent=11 // pred_region
          %s303 = smul.u32 4, %s29
          %s305 = ssub.s32 512, 512
          %306 = vsyncadd [#allocation7], %s305
          %s307 = smul.addr %s303, 128
          %s308 = scalar_lea.hbm %s0, %s307
          %s309 = sshll.u32 [#allocation6], 4
          %s310 = int_to_ptr.vmem [resolvable:$true] %s309
          %315 = dma.hbm_to_vmem [thread:$0]  %s308, 512, %s310, [#allocation7], 128, 128, 8
        $region16: #{shortcut_pool.1} parent=11 // pred_fallthru
          _
        // Predicated region
        $region17: #{shortcut_pool.1} parent=11 // pred_check
          %p316 = pneg %p108
        $region18: #{shortcut_pool.1} parent=11 // pred_check_branch
          %318 = sbr.rel (%p316) target = $region20
        $region19: #{shortcut_pool.1} parent=11 // pred_region
          %s320 = ssub.s32 1024, 1024
          %321 = vsyncadd [#allocation9], %s320
          %s322 = sshll.u32 [#allocation8], 4
          %s323 = int_to_ptr.vmem [resolvable:$true] %s322
          %328 = dma.hbm_to_vmem [thread:$0]  %s2, 1024, %s323, [#allocation9], 128, 128, 8
        $region20: #{shortcut_pool.1} parent=11 // pred_fallthru
          _
        // Predicated region
        $region21: #{shortcut_pool.1} parent=11 // pred_check
          %p329 = pneg %p129
        $region22: #{shortcut_pool.1} parent=11 // pred_check_branch
          %331 = sbr.rel (%p329) target = $region24
        $region23: #{shortcut_pool.1} parent=11 // pred_region
          _
        $region24: #{shortcut_pool.1} parent=11 // pred_fallthru
          _
        // Predicated region
        $region25: #{shortcut_pool.1} parent=11 // pred_check
          %p332 = pneg %p150
        $region26: #{shortcut_pool.1} parent=11 // pred_check_branch
          %334 = sbr.rel (%p332) target = $region28
        $region27: #{shortcut_pool.1} parent=11 // pred_region
          _
        $region28: #{shortcut_pool.1} parent=11 // pred_fallthru
          _
        // Predicated region
        $region29: #{shortcut_pool.1} parent=11 // pred_check
          %p335 = pneg %p171
        $region30: #{shortcut_pool.1} parent=11 // pred_check_branch
          %337 = sbr.rel (%p335) target = $region32
        $region31: #{shortcut_pool.1} parent=11 // pred_region
          _
        $region32: #{shortcut_pool.1} parent=11 // pred_fallthru
          _
        // Predicated region
        $region33: #{shortcut_pool.1} parent=11 // pred_check
          %p338 = pneg %p192
        $region34: #{shortcut_pool.1} parent=11 // pred_check_branch
          %340 = sbr.rel (%p338) target = $region36
        $region35: #{shortcut_pool.1} parent=11 // pred_region
          %s342 = ssub.s32 4096, 4096
          %343 = vsyncadd [#allocation9], %s342
          %s344 = sshll.u32 [#allocation10], 4
          %s345 = int_to_ptr.vmem [resolvable:$true] %s344
          %350 = dma.hbm_to_vmem [thread:$0]  %s6, 4096, %s345, [#allocation9], 256, 256, 16
        $region36: #{shortcut_pool.1} parent=11 // pred_fallthru
          _
        // Predicated region
        $region37: #{shortcut_pool.1} parent=11 // pred_check
          %p351 = pneg %p213
        $region38: #{shortcut_pool.1} parent=11 // pred_check_branch
          %353 = sbr.rel (%p351) target = $region40
        $region39: #{shortcut_pool.1} parent=11 // pred_region
          _
        $region40: #{shortcut_pool.1} parent=11 // pred_fallthru
          _
      $region12: #{shortcut_pool.1} parent=5 // pred_fallthru
        _
      %p354 = scmp.lt.s32.totalorder %s19, 2
      // Predicated region
      $region41: #{shortcut_pool.1} parent=5 // pred_check
        %p355 = pneg %p354
      $region42: #{shortcut_pool.1} parent=5 // pred_check_branch
        %357 = sbr.rel (%p355) target = $region44
      $region43: #{shortcut_pool.1} parent=5 // pred_region
        // Predicated region
        $region45: #{shortcut_pool.1} parent=43 // pred_check
          %p358 = pneg %p81
        $region46: #{shortcut_pool.1} parent=43 // pred_check_branch
          %360 = sbr.rel (%p358) target = $region48
        $region47: #{shortcut_pool.1} parent=43 // pred_region
          %p361 = scmp.eq.s32.totalorder %s26, 1
          %s362 = scalar_select %p361, %s27, 0
          %s363 = smul.u32 4, %s362
          %p364 = scmp.lt.s32.totalorder %s363, 3
          %s365 = scalar_select %p364, %s363, 3
          %s366 = smul.addr %s365, 8
          %s367 = scalar_lea.vmem %s1, %s366
          %p368 = scmp.eq.s32.totalorder %s26, 1
          %s369 = scalar_select %p368, %s27, 0
          %s370 = smul.u32 4, %s369
        $region48: #{shortcut_pool.1} parent=43 // pred_fallthru
          _
      $region44: #{shortcut_pool.1} parent=5 // pred_fallthru
        _
      %p371 = scmp.le.s32.totalorder 1, %s19
      %p372 = scmp.lt.s32.totalorder %s19, 3
      %p373 = pnand %p371, %p372
      %p374 = pneg %p373
      // Predicated region
      $region49: #{shortcut_pool.1} parent=5 // pred_check
        _
      $region50: #{shortcut_pool.1} parent=5 // pred_check_branch
        %376 = sbr.rel (%p373) target = $region52
      $region51: #{shortcut_pool.1} parent=5 // pred_region
        %s377 = ssub.s32 %s19, 1
        // Predicated region
        $region53: #{shortcut_pool.1} parent=51 // pred_check
          %p378 = pneg %p57
        $region54: #{shortcut_pool.1} parent=51 // pred_check_branch
          %380 = sbr.rel (%p378) target = $region56
        $region55: #{shortcut_pool.1} parent=51 // pred_region
          %381 = dma.done [#allocation7], 512
        $region56: #{shortcut_pool.1} parent=51 // pred_fallthru
          _
        // Predicated region
        $region57: #{shortcut_pool.1} parent=51 // pred_check
          %p382 = pneg %p108
        $region58: #{shortcut_pool.1} parent=51 // pred_check_branch
          %384 = sbr.rel (%p382) target = $region60
        $region59: #{shortcut_pool.1} parent=51 // pred_region
          %385 = dma.done [#allocation9], 1024
        $region60: #{shortcut_pool.1} parent=51 // pred_fallthru
          _
        // Predicated region
        $region61: #{shortcut_pool.1} parent=51 // pred_check
          %p386 = pneg %p192
        $region62: #{shortcut_pool.1} parent=51 // pred_check_branch
          %388 = sbr.rel (%p386) target = $region64
        $region63: #{shortcut_pool.1} parent=51 // pred_region
          %389 = dma.done [#allocation9], 4096
        $region64: #{shortcut_pool.1} parent=51 // pred_fallthru
          _
        %p390 = pneg %p57
        %p391 = pneg %p54
        %p392 = scmp.eq.s32.totalorder %s28, 1
        %s393 = scalar_select %p392, %s29, 0
        %s394 = smul.u32 4, %s393
        %p395 = scmp.lt.s32.totalorder %s394, 3
        %s396 = scalar_select %p395, %s394, 3
        %s397 = smul.addr %s396, 8
        %s398 = scalar_lea.vmem %s1, %s397
        %p399 = pneg %p87
        %p400 = pneg %p84
        %p401 = pneg %p108
        %p402 = pneg %p105
        %p403 = pneg %p129
        %p404 = pneg %p126
        %p405 = pneg %p150
        %p406 = pneg %p147
        %p407 = pneg %p171
        %p408 = pneg %p168
        %p409 = pneg %p192
        %p410 = pneg %p189
        %p411 = pneg %p213
        %p412 = pneg %p210
        %p413 = pneg %p243
        %p414 = pneg %p240
        %p415 = scmp.eq.s32.totalorder %s28, 1
        %s416 = scalar_select %p415, %s29, 0
        %p417 = scmp.lt.s32.totalorder %s416, 0
        %s418 = scalar_select %p417, %s416, 0
        %s419 = smul.addr %s418, 2
        %s420 = smul.addr %s419, 8
        %s421 = scalar_lea.vmem %s8, %s420
        %p422 = pneg %p264
        %p423 = pneg %p261
        %p424 = pneg %p285
        %p425 = pneg %p282
        %s426 = smul.u32 4, %s29
        %p427 = scmp.eq.s32.totalorder %s28, 1
        %s428 = scalar_select %p427, %s29, 0
        %s429 = smul.u32 4, %s428
        %p430 = scmp.lt.s32.totalorder %s429, 3
        %s431 = scalar_select %p430, %s429, 3
        %s432 = smul.addr %s431, 8
        %s433 = scalar_lea.vmem %s1, %s432
        %p434 = scmp.eq.s32.totalorder %s28, 1
        %s435 = scalar_select %p434, %s29, 0
        %s436 = smul.u32 4, %s435
        %p437 = scmp.eq.s32.totalorder %s28, 1
        %s438 = scalar_select %p437, %s29, 0
        %p439 = scmp.lt.s32.totalorder %s438, 0
        %s440 = scalar_select %p439, %s438, 0
        %s441 = smul.addr %s440, 2
        %s442 = smul.addr %s441, 8
        %s443 = scalar_lea.vmem %s8, %s442
        %p444 = scmp.eq.s32.totalorder %s28, 1
        %s445 = scalar_select %p444, %s29, 0
        %p446 = scmp.eq.s32.totalorder %s28, 0
        %p447 = scmp.eq.s32.totalorder %s29, 0
        %p448 = pnand %p446, %p447
        %p449 = pneg %p448
        // Predicated region
        $region65: #{shortcut_pool.1} parent=51 // pred_check
          _
        $region66: #{shortcut_pool.1} parent=51 // pred_check_branch
          %451 = sbr.rel (%p448) target = $region68
        $region67: #{shortcut_pool.1} parent=51 // pred_region
          %452 = vst [vmem:[#allocation2] sm:$0x1] 0.0
          %453 = vst [vmem:[#allocation3] sm:$0x1] 0.0
          %v454 = vlaneseq
          %vm455 = vcmp.ge.s32.totalorder %v454, 0
          %vm456 = vcmp.lt.s32.totalorder %v454, 256
          %vm457 = vmand %vm455, %vm456
          %458 = vst.msk [vmem:[%s9] sm:$0x3] %vm457, 0.0
          %459 = vst.msk [vmem:[%s10] sm:$0x3] %vm457, 0.0
        $region68: #{shortcut_pool.1} parent=51 // pred_fallthru
          _
        // Predicated region
        $region69: #{shortcut_pool.1} parent=51 // pred_check
          %p460 = pneg %p446
        $region70: #{shortcut_pool.1} parent=51 // pred_check_branch
          %462 = sbr.rel (%p460) target = $region72
        $region71: #{shortcut_pool.1} parent=51 // pred_region
          %v463 = vld [vmem:[#allocation6] ss:$2 sm:$0xff]
          %s464 = scalar_lea.vmem [#allocation6], 16
          %v465 = vld [vmem:[%s464] ss:$2 sm:$0xff]
          %v466 = vld [vmem:[#allocation8] sm:$0xff]
          %v467 = vld [vmem:[#allocation8 + $0x8] sm:$0xff]
          %v468 = vld [vmem:[#allocation8 + $0x10] sm:$0xff]
          %v469 = vld [vmem:[#allocation8 + $0x18] sm:$0xff]
          %v470 = vld [vmem:[#allocation8 + $0x20] sm:$0xff]
          %v471 = vld [vmem:[#allocation8 + $0x28] sm:$0xff]
          %v472 = vld [vmem:[#allocation8 + $0x30] sm:$0xff]
          %v473 = vld [vmem:[#allocation8 + $0x38] sm:$0xff]
          %v474 = vld [vmem:[%s3] sm:$0x1]
          %v476 = vlaneseq
          %v477 = vshrl.u32 %v476, 7
          %v478 = vsub.s32 0, %v477
          %v479 = vrot.slane %v474, %v478
          %vm481 = vcmask 523264
          %v483 = vsel %vm481, %v463, 0
          %v486 = vsel %vm481, %v465, 0
          %488 = vmatprep.subr.mxu0 0.0
          %489 = vmatpush1.msra.mxu0 %v466
          %490 = vmatprep.subr.mxu0 0.0
          %491 = vmatpush1.msra.mxu0 %v467
          %492 = vmatprep.subr.mxu0 0.0
          %493 = vmatpush1.msra.mxu0 %v468
          %494 = vmatprep.subr.mxu0 0.0
          %495 = vmatpush1.msra.mxu0 %v469
          %496 = vmatprep.subr.mxu0 0.0
          %497 = vmatpush1.msra.mxu0 %v470
          %498 = vmatprep.subr.mxu0 0.0
          %499 = vmatpush1.msra.mxu0 %v471
          %500 = vmatprep.subr.mxu0 0.0
          %501 = vmatpush1.msra.mxu0 %v472
          %502 = vmatprep.subr.mxu0 0.0
          %503 = vmatpush1.msra.mxu0 %v473
          %504 = vmatprep.subr.mxu0 0.0
          %505 = vmatpush1.msra.mxu0 0.0
          %506 = vmatprep.subr.mxu0 0.0
          %507 = vmatpush1.msra.mxu0 0.0
          %508 = vmatprep.subr.mxu0 0.0
          %509 = vmatpush1.msra.mxu0 0.0
          %510 = vmatprep.subr.mxu0 0.0
          %511 = vmatpush1.msra.mxu0 0.0
          %512 = vmatprep.subr.mxu0 0.0
          %513 = vmatpush1.msra.mxu0 0.0
          %514 = vmatprep.subr.mxu0 0.0
          %515 = vmatpush1.msra.mxu0 0.0
          %516 = vmatprep.subr.mxu0 0.0
          %517 = vmatpush1.msra.mxu0 0.0
          %518 = vmatprep.subr.mxu0 0.0
          %519 = vmatpush1.msra.mxu0 0.0
          %520 = vmatprep.subr.mxu0 0.0
          %521 = vmatpush1.msra.mxu0 0.0
          %522 = vmatprep.subr.mxu0 0.0
          %523 = vmatpush1.msra.mxu0 0.0
          %524 = vmatprep.subr.mxu0 0.0
          %525 = vmatpush1.msra.mxu0 0.0
          %526 = vmatprep.subr.mxu0 0.0
          %527 = vmatpush1.msra.mxu0 0.0
          %528 = vmatprep.subr.mxu0 0.0
          %529 = vmatpush1.msra.mxu0 0.0
          %530 = vmatprep.subr.mxu0 0.0
          %531 = vmatpush1.msra.mxu0 0.0
          %532 = vmatprep.subr.mxu0 0.0
          %533 = vmatpush1.msra.mxu0 0.0
          %534 = vmatprep.subr.mxu0 0.0
          %535 = vmatpush1.msra.mxu0 0.0
          %536 = vmatprep.subr.mxu0 0.0
          %537 = vmatpush1.msra.mxu0 0.0
          %538 = vmatprep.subr.mxu0 0.0
          %539 = vmatpush1.msra.mxu0 0.0
          %540 = vmatprep.subr.mxu0 0.0
          %541 = vmatpush1.msra.mxu0 0.0
          %542 = vmatprep.subr.mxu0 0.0
          %543 = vmatpush1.msra.mxu0 0.0
          %544 = vmatprep.subr.mxu0 0.0
          %545 = vmatpush1.msra.mxu0 0.0
          %546 = vmatprep.subr.mxu0 0.0
          %547 = vmatpush1.msra.mxu0 0.0
          %548 = vmatprep.subr.mxu0 0.0
          %549 = vmatpush1.msra.mxu0 0.0
          %550 = vmatprep.subr.mxu0 0.0
          %551 = vmatpush1.msra.mxu0 0.0
          %552 = vmatprep.mubr.f32.mxu0 0.0
          %553 = vmatmul.mubr.f32.gmra.mrb[0].mxu0 %v483
          %v554 = vpop.f32.mrb[0].mxu0
          %v555 = vadd.f32 %v479, %v554
          %v556 = vpop.f32.mrb[0].mxu0
          %557 = vmatprep.mubr.f32.mxu0 0.0
          %558 = vmatmul.mubr.f32.gmra.mrb[0].mxu0 %v486
          %v559 = vpop.f32.mrb[0].mxu0
          %v560 = vadd.f32 %v479, %v559
          %v561 = vpop.f32.mrb[0].mxu0
          %562 = vdwg.mxu0
          %v563 = vld [vmem:[#allocation2] sm:$0x1]
          %v564 = vadd.f32 %v555, %v560
          %v565 = vrot.slane %v564, 4
          %v566 = vadd.f32 %v564, %v565
          %v567 = vrot.slane %v566, 2
          %v568 = vadd.f32 %v566, %v567
          %v569 = vrot.slane %v568, 1
          %v570 = vadd.f32 %v568, %v569
          %v571 = vadd.f32 %v563, %v570
          %572 = vst [vmem:[#allocation2] sm:$0x1] %v571
          %v573 = vld [vmem:[#allocation3] sm:$0x1]
          %v574 = vmul.f32 %v555, %v555
          %v575 = vmul.f32 %v560, %v560
          %v576 = vadd.f32 %v574, %v575
          %v577 = vrot.slane %v576, 4
          %v578 = vadd.f32 %v576, %v577
          %v579 = vrot.slane %v578, 2
          %v580 = vadd.f32 %v578, %v579
          %v581 = vrot.slane %v580, 1
          %v582 = vadd.f32 %v580, %v581
          %v583 = vadd.f32 %v573, %v582
          %584 = vst [vmem:[#allocation3] sm:$0x1] %v583
        $region72: #{shortcut_pool.1} parent=51 // pred_fallthru
          _
        %p585 = scmp.eq.s32.totalorder %s28, 1
        %p586 = pnand %p585, %p447
        %p587 = pneg %p586
        // Predicated region
        $region73: #{shortcut_pool.1} parent=51 // pred_check
          _
        $region74: #{shortcut_pool.1} parent=51 // pred_check_branch
          %589 = sbr.rel (%p586) target = $region76
        $region75: #{shortcut_pool.1} parent=51 // pred_region
          %v590 = vld [vmem:[#allocation2] sm:$0x1]
          %v591 = vmul.f32 %v590, 0.0625
          %v592 = vld [vmem:[#allocation3] sm:$0x1]
          %v593 = vmul.f32 %v592, 0.0625
          %v594 = vmul.f32 %v591, %v591
          %v595 = vsub.f32 %v593, %v594
          %v596 = vmax.f32 %v595, 0.0
          %v597 = vld [vmem:[%s4] sm:$0x1]
          %v598 = vadd.f32 %v596, 1e-05
          %v599 = vrsqrt.pop %v598
          %v600 = vmul.f32 %v597, %v599
          %601 = vst [vmem:[#allocation4] sm:$0x1] %v600
          %v602 = vld [vmem:[%s5] sm:$0x1]
          %v603 = vld [vmem:[#allocation4] sm:$0x1]
          %v604 = vmul.f32 %v591, %v603
          %v605 = vsub.f32 %v602, %v604
          %606 = vst [vmem:[#allocation5] sm:$0x1] %v605
        $region76: #{shortcut_pool.1} parent=51 // pred_fallthru
          _
        // Predicated region
        $region77: #{shortcut_pool.1} parent=51 // pred_check
          %p607 = pneg %p585
        $region78: #{shortcut_pool.1} parent=51 // pred_check_branch
          %609 = sbr.rel (%p607) target = $region80
        $region79: #{shortcut_pool.1} parent=51 // pred_region
          %v610 = vld [vmem:[#allocation6] ss:$4 sm:$0xff]
          %v611 = vld [vmem:[#allocation8] sm:$0xff]
          %v612 = vld [vmem:[#allocation8 + $0x8] sm:$0xff]
          %v613 = vld [vmem:[#allocation8 + $0x10] sm:$0xff]
          %v614 = vld [vmem:[#allocation8 + $0x18] sm:$0xff]
          %v615 = vld [vmem:[#allocation8 + $0x20] sm:$0xff]
          %v616 = vld [vmem:[#allocation8 + $0x28] sm:$0xff]
          %v617 = vld [vmem:[#allocation8 + $0x30] sm:$0xff]
          %v618 = vld [vmem:[#allocation8 + $0x38] sm:$0xff]
          %v619 = vld [vmem:[%s3] sm:$0x1]
          %v621 = vlaneseq
          %v622 = vshrl.u32 %v621, 7
          %v623 = vsub.s32 0, %v622
          %v624 = vrot.slane %v619, %v623
          %vm626 = vcmask 523264
          %v628 = vsel %vm626, %v610, 0
          %630 = vmatprep.subr.mxu0 0.0
          %631 = vmatpush1.msra.mxu0 %v611
          %632 = vmatprep.subr.mxu0 0.0
          %633 = vmatpush1.msra.mxu0 %v612
          %634 = vmatprep.subr.mxu0 0.0
          %635 = vmatpush1.msra.mxu0 %v613
          %636 = vmatprep.subr.mxu0 0.0
          %637 = vmatpush1.msra.mxu0 %v614
          %638 = vmatprep.subr.mxu0 0.0
          %639 = vmatpush1.msra.mxu0 %v615
          %640 = vmatprep.subr.mxu0 0.0
          %641 = vmatpush1.msra.mxu0 %v616
          %642 = vmatprep.subr.mxu0 0.0
          %643 = vmatpush1.msra.mxu0 %v617
          %644 = vmatprep.subr.mxu0 0.0
          %645 = vmatpush1.msra.mxu0 %v618
          %646 = vmatprep.subr.mxu0 0.0
          %647 = vmatpush1.msra.mxu0 0.0
          %648 = vmatprep.subr.mxu0 0.0
          %649 = vmatpush1.msra.mxu0 0.0
          %650 = vmatprep.subr.mxu0 0.0
          %651 = vmatpush1.msra.mxu0 0.0
          %652 = vmatprep.subr.mxu0 0.0
          %653 = vmatpush1.msra.mxu0 0.0
          %654 = vmatprep.subr.mxu0 0.0
          %655 = vmatpush1.msra.mxu0 0.0
          %656 = vmatprep.subr.mxu0 0.0
          %657 = vmatpush1.msra.mxu0 0.0
          %658 = vmatprep.subr.mxu0 0.0
          %659 = vmatpush1.msra.mxu0 0.0
          %660 = vmatprep.subr.mxu0 0.0
          %661 = vmatpush1.msra.mxu0 0.0
          %662 = vmatprep.subr.mxu0 0.0
          %663 = vmatpush1.msra.mxu0 0.0
          %664 = vmatprep.subr.mxu0 0.0
          %665 = vmatpush1.msra.mxu0 0.0
          %666 = vmatprep.subr.mxu0 0.0
          %667 = vmatpush1.msra.mxu0 0.0
          %668 = vmatprep.subr.mxu0 0.0
          %669 = vmatpush1.msra.mxu0 0.0
          %670 = vmatprep.subr.mxu0 0.0
          %671 = vmatpush1.msra.mxu0 0.0
          %672 = vmatprep.subr.mxu0 0.0
          %673 = vmatpush1.msra.mxu0 0.0
          %674 = vmatprep.subr.mxu0 0.0
          %675 = vmatpush1.msra.mxu0 0.0
          %676 = vmatprep.subr.mxu0 0.0
          %677 = vmatpush1.msra.mxu0 0.0
          %678 = vmatprep.subr.mxu0 0.0
          %679 = vmatpush1.msra.mxu0 0.0
          %680 = vmatprep.subr.mxu0 0.0
          %681 = vmatpush1.msra.mxu0 0.0
          %682 = vmatprep.subr.mxu0 0.0
          %683 = vmatpush1.msra.mxu0 0.0
          %684 = vmatprep.subr.mxu0 0.0
          %685 = vmatpush1.msra.mxu0 0.0
          %686 = vmatprep.subr.mxu0 0.0
          %687 = vmatpush1.msra.mxu0 0.0
          %688 = vmatprep.subr.mxu0 0.0
          %689 = vmatpush1.msra.mxu0 0.0
          %690 = vmatprep.subr.mxu0 0.0
          %691 = vmatpush1.msra.mxu0 0.0
          %692 = vmatprep.subr.mxu0 0.0
          %693 = vmatpush1.msra.mxu0 0.0
          %694 = vmatprep.mubr.f32.mxu0 0.0
          %695 = vmatmul.mubr.f32.gmra.mrb[0].mxu0 %v628
          %v696 = vpop.f32.mrb[0].mxu0
          %v697 = vadd.f32 %v624, %v696
          %v698 = vpop.f32.mrb[0].mxu0
          %699 = vdwg.mxu0
          %v700 = vld [vmem:[%s433] ss:$4 sm:$0xff]
          %s701 = scalar_lea.vmem %s433, 1
          %v702 = vld [vmem:[%s701] ss:$4 sm:$0xff]
          %s703 = scalar_lea.vmem %s433, 2
          %v704 = vld [vmem:[%s703] ss:$4 sm:$0xff]
          %v705 = vmax.f32 %v700, %v702
          %v706 = vmax.f32 %v705, %v704
          %v707 = vld [vmem:[#allocation4] sm:$0x1]
          %v709 = vlaneseq
          %v710 = vshrl.u32 %v709, 7
          %v711 = vsub.s32 0, %v710
          %v712 = vrot.slane %v707, %v711
          %v714 = vmul.f32 %v697, %v712
          %v715 = vld [vmem:[#allocation5] sm:$0x1]
          %v717 = vlaneseq
          %v718 = vshrl.u32 %v717, 7
          %v719 = vsub.s32 0, %v718
          %v720 = vrot.slane %v715, %v719
          %v722 = vadd.f32 %v714, %v720
          %v723 = vadd.f32 %v722, %v706
          %v724 = vld [vmem:[#allocation10] sm:$0xff]
          %v725 = vld [vmem:[#allocation10 + $0x8] sm:$0xff]
          %v726 = vld [vmem:[#allocation10 + $0x10] sm:$0xff]
          %v727 = vld [vmem:[#allocation10 + $0x18] sm:$0xff]
          %v728 = vld [vmem:[#allocation10 + $0x20] sm:$0xff]
          %v729 = vld [vmem:[#allocation10 + $0x28] sm:$0xff]
          %v730 = vld [vmem:[#allocation10 + $0x30] sm:$0xff]
          %v731 = vld [vmem:[#allocation10 + $0x38] sm:$0xff]
          %v732 = vld [vmem:[#allocation10 + $0x40] sm:$0xff]
          %v733 = vld [vmem:[#allocation10 + $0x48] sm:$0xff]
          %v734 = vld [vmem:[#allocation10 + $0x50] sm:$0xff]
          %v735 = vld [vmem:[#allocation10 + $0x58] sm:$0xff]
          %v736 = vld [vmem:[#allocation10 + $0x60] sm:$0xff]
          %v737 = vld [vmem:[#allocation10 + $0x68] sm:$0xff]
          %v738 = vld [vmem:[#allocation10 + $0x70] sm:$0xff]
          %v739 = vld [vmem:[#allocation10 + $0x78] sm:$0xff]
          %v740 = vld [vmem:[#allocation10 + $0x80] sm:$0xff]
          %v741 = vld [vmem:[#allocation10 + $0x88] sm:$0xff]
          %v742 = vld [vmem:[#allocation10 + $0x90] sm:$0xff]
          %v743 = vld [vmem:[#allocation10 + $0x98] sm:$0xff]
          %v744 = vld [vmem:[#allocation10 + $0xa0] sm:$0xff]
          %v745 = vld [vmem:[#allocation10 + $0xa8] sm:$0xff]
          %v746 = vld [vmem:[#allocation10 + $0xb0] sm:$0xff]
          %v747 = vld [vmem:[#allocation10 + $0xb8] sm:$0xff]
          %v748 = vld [vmem:[#allocation10 + $0xc0] sm:$0xff]
          %v749 = vld [vmem:[#allocation10 + $0xc8] sm:$0xff]
          %v750 = vld [vmem:[#allocation10 + $0xd0] sm:$0xff]
          %v751 = vld [vmem:[#allocation10 + $0xd8] sm:$0xff]
          %v752 = vld [vmem:[#allocation10 + $0xe0] sm:$0xff]
          %v753 = vld [vmem:[#allocation10 + $0xe8] sm:$0xff]
          %v754 = vld [vmem:[#allocation10 + $0xf0] sm:$0xff]
          %v755 = vld [vmem:[#allocation10 + $0xf8] sm:$0xff]
          %v756 = vld [vmem:[%s7] sm:$0x3]
          %v758 = vlaneseq
          %v759 = vshrl.u32 %v758, 7
          %v760 = vsub.s32 0, %v759
          %v761 = vrot.slane %v756, %v760
          %v762 = vlaneseq
          %v763 = vshrl.u32 %v762, 7
          %v764 = vsub.s32 1, %v763
          %v765 = vrot.slane %v756, %v764
          %768 = vmatprep.subr.mxu0 %v725
          %769 = vmatpush1.msra.mxu0 %v724
          %770 = vmatprep.subr.mxu0 %v727
          %771 = vmatpush1.msra.mxu0 %v726
          %772 = vmatprep.subr.mxu0 %v729
          %773 = vmatpush1.msra.mxu0 %v728
          %774 = vmatprep.subr.mxu0 %v731
          %775 = vmatpush1.msra.mxu0 %v730
          %776 = vmatprep.subr.mxu0 %v733
          %777 = vmatpush1.msra.mxu0 %v732
          %778 = vmatprep.subr.mxu0 %v735
          %779 = vmatpush1.msra.mxu0 %v734
          %780 = vmatprep.subr.mxu0 %v737
          %781 = vmatpush1.msra.mxu0 %v736
          %782 = vmatprep.subr.mxu0 %v739
          %783 = vmatpush1.msra.mxu0 %v738
          %784 = vmatprep.subr.mxu0 %v741
          %785 = vmatpush1.msra.mxu0 %v740
          %786 = vmatprep.subr.mxu0 %v743
          %787 = vmatpush1.msra.mxu0 %v742
          %788 = vmatprep.subr.mxu0 %v745
          %789 = vmatpush1.msra.mxu0 %v744
          %790 = vmatprep.subr.mxu0 %v747
          %791 = vmatpush1.msra.mxu0 %v746
          %792 = vmatprep.subr.mxu0 %v749
          %793 = vmatpush1.msra.mxu0 %v748
          %794 = vmatprep.subr.mxu0 %v751
          %795 = vmatpush1.msra.mxu0 %v750
          %796 = vmatprep.subr.mxu0 %v753
          %797 = vmatpush1.msra.mxu0 %v752
          %798 = vmatprep.subr.mxu0 %v755
          %799 = vmatpush1.msra.mxu0 %v754
          %800 = vmatprep.subr.mxu0 0.0
          %801 = vmatpush1.msra.mxu0 0.0
          %802 = vmatprep.subr.mxu0 0.0
          %803 = vmatpush1.msra.mxu0 0.0
          %804 = vmatprep.subr.mxu0 0.0
          %805 = vmatpush1.msra.mxu0 0.0
          %806 = vmatprep.subr.mxu0 0.0
          %807 = vmatpush1.msra.mxu0 0.0
          %808 = vmatprep.subr.mxu0 0.0
          %809 = vmatpush1.msra.mxu0 0.0
          %810 = vmatprep.subr.mxu0 0.0
          %811 = vmatpush1.msra.mxu0 0.0
          %812 = vmatprep.subr.mxu0 0.0
          %813 = vmatpush1.msra.mxu0 0.0
          %814 = vmatprep.subr.mxu0 0.0
          %815 = vmatpush1.msra.mxu0 0.0
          %816 = vmatprep.subr.mxu0 0.0
          %817 = vmatpush1.msra.mxu0 0.0
          %818 = vmatprep.subr.mxu0 0.0
          %819 = vmatpush1.msra.mxu0 0.0
          %820 = vmatprep.subr.mxu0 0.0
          %821 = vmatpush1.msra.mxu0 0.0
          %822 = vmatprep.subr.mxu0 0.0
          %823 = vmatpush1.msra.mxu0 0.0
          %824 = vmatprep.subr.mxu0 0.0
          %825 = vmatpush1.msra.mxu0 0.0
          %826 = vmatprep.subr.mxu0 0.0
          %827 = vmatpush1.msra.mxu0 0.0
          %828 = vmatprep.subr.mxu0 0.0
          %829 = vmatpush1.msra.mxu0 0.0
          %830 = vmatprep.subr.mxu0 0.0
          %831 = vmatpush1.msra.mxu0 0.0
          %832 = vmatprep.mubr.f32.mxu0 0.0
          %833 = vmatmul.mubr.f32.gmra.mrb[0].mxu0 %v723
          %v834 = vpop.f32.mrb[0].mxu0
          %v835 = vadd.f32 %v761, %v834
          %v836 = vpop.f32.mrb[0].mxu0
          %v837 = vadd.f32 %v765, %v836
          %838 = vdwg.mxu0
          %839 = vst [vmem:[%s443] sm:$0xff] %v835
          %840 = vst [vmem:[%s443 + $0x8] sm:$0xff] %v837
          %v841 = vld [vmem:[%s9] sm:$0x3]
          %v842 = vrot.slane %v835, 4
          %v843 = vadd.f32 %v835, %v842
          %v844 = vrot.slane %v843, 2
          %v845 = vadd.f32 %v843, %v844
          %v846 = vrot.slane %v845, 1
          %v847 = vadd.f32 %v845, %v846
          %v848 = vrot.slane %v837, 4
          %v849 = vadd.f32 %v837, %v848
          %v850 = vrot.slane %v849, 2
          %v851 = vadd.f32 %v849, %v850
          %v852 = vrot.slane %v851, 1
          %v853 = vadd.f32 %v851, %v852
          %v856 = vcombine.low %v847, %v853
          %v858 = vunpack.c.l.s4 1966171168
          %v859 = vunpack.c.0.s8 %v858
          %v860 = vlaneseq
          %v861 = vshrl.u32 %v860, 7
          %v862 = vsub.s32 %v859, %v861
          %v863 = vrot.slane %v856, %v862
          %v865 = vunpack.c.l.s4 1966171168
          %v866 = vunpack.c.0.s8 %v865
          %v867 = vlaneseq
          %v868 = vshrl.u32 %v867, 7
          %v869 = vsub.s32 %v866, %v868
          %v870 = vrot.slane %v863, %v869
          %v872 = vadd.f32 %v841, %v870
          %v873 = vlaneseq
          %vm874 = vcmp.ge.s32.totalorder %v873, 0
          %vm875 = vcmp.lt.s32.totalorder %v873, 256
          %vm876 = vmand %vm874, %vm875
          %877 = vst.msk [vmem:[%s9] sm:$0x3] %vm876, %v872
          %v878 = vld [vmem:[%s10] sm:$0x3]
          %v879 = vmul.f32 %v835, %v835
          %v880 = vmul.f32 %v837, %v837
          %v881 = vrot.slane %v879, 4
          %v882 = vadd.f32 %v879, %v881
          %v883 = vrot.slane %v882, 2
          %v884 = vadd.f32 %v882, %v883
          %v885 = vrot.slane %v884, 1
          %v886 = vadd.f32 %v884, %v885
          %v887 = vrot.slane %v880, 4
          %v888 = vadd.f32 %v880, %v887
          %v889 = vrot.slane %v888, 2
          %v890 = vadd.f32 %v888, %v889
          %v891 = vrot.slane %v890, 1
          %v892 = vadd.f32 %v890, %v891
          %v895 = vcombine.low %v886, %v892
          %v897 = vunpack.c.l.s4 1966171168
          %v898 = vunpack.c.0.s8 %v897
          %v899 = vlaneseq
          %v900 = vshrl.u32 %v899, 7
          %v901 = vsub.s32 %v898, %v900
          %v902 = vrot.slane %v895, %v901
          %v904 = vunpack.c.l.s4 1966171168
          %v905 = vunpack.c.0.s8 %v904
          %v906 = vlaneseq
          %v907 = vshrl.u32 %v906, 7
          %v908 = vsub.s32 %v905, %v907
          %v909 = vrot.slane %v902, %v908
          %v911 = vadd.f32 %v878, %v909
          %912 = vst.msk [vmem:[%s10] sm:$0x3] %vm876, %v911
        $region80: #{shortcut_pool.1} parent=51 // pred_fallthru
          _
        %p913 = scmp.eq.s32.totalorder %s28, 1
        %s914 = scalar_select %p913, %s29, 0
        %p915 = scmp.lt.s32.totalorder %s914, 0
        %s916 = scalar_select %p915, %s914, 0
        %s917 = smul.addr %s916, 2
        %s918 = smul.addr %s917, 8
        %s919 = scalar_lea.vmem %s8, %s918
        // Predicated region
        $region81: #{shortcut_pool.1} parent=51 // pred_check
          %p920 = pneg %p240
        $region82: #{shortcut_pool.1} parent=51 // pred_check_branch
          %922 = sbr.rel (%p920) target = $region84
        $region83: #{shortcut_pool.1} parent=51 // pred_region
          %p923 = scmp.eq.s32.totalorder %s28, 1
          %s924 = scalar_select %p923, %s29, 0
        $region84: #{shortcut_pool.1} parent=51 // pred_fallthru
          _
        // Predicated region
        $region85: #{shortcut_pool.1} parent=51 // pred_check
          %p925 = pneg %p261
        $region86: #{shortcut_pool.1} parent=51 // pred_check_branch
          %927 = sbr.rel (%p925) target = $region88
        $region87: #{shortcut_pool.1} parent=51 // pred_region
          _
        $region88: #{shortcut_pool.1} parent=51 // pred_fallthru
          _
        // Predicated region
        $region89: #{shortcut_pool.1} parent=51 // pred_check
          %p928 = pneg %p282
        $region90: #{shortcut_pool.1} parent=51 // pred_check_branch
          %930 = sbr.rel (%p928) target = $region92
        $region91: #{shortcut_pool.1} parent=51 // pred_region
          _
        $region92: #{shortcut_pool.1} parent=51 // pred_fallthru
          _
        // Predicated region
        $region93: #{shortcut_pool.1} parent=51 // pred_check
          %p931 = pneg %p261
        $region94: #{shortcut_pool.1} parent=51 // pred_check_branch
          %933 = sbr.rel (%p931) target = $region96
        $region95: #{shortcut_pool.1} parent=51 // pred_region
          _
        $region96: #{shortcut_pool.1} parent=51 // pred_fallthru
          _
        // Predicated region
        $region97: #{shortcut_pool.1} parent=51 // pred_check
          %p934 = pneg %p282
        $region98: #{shortcut_pool.1} parent=51 // pred_check_branch
          %936 = sbr.rel (%p934) target = $region100
        $region99: #{shortcut_pool.1} parent=51 // pred_region
          _
        $region100: #{shortcut_pool.1} parent=51 // pred_fallthru
          _
      $region52: #{shortcut_pool.1} parent=5 // pred_fallthru
        _
      %p937 = scmp.le.s32.totalorder 2, %s19
      // Predicated region
      $region101: #{shortcut_pool.1} parent=5 // pred_check
        %p938 = pneg %p937
      $region102: #{shortcut_pool.1} parent=5 // pred_check_branch
        %940 = sbr.rel (%p938) target = $region104
      $region103: #{shortcut_pool.1} parent=5 // pred_region
        %s941 = ssub.s32 %s19, 2
        // Predicated region
        $region105: #{shortcut_pool.1} parent=103 // pred_check
          %p942 = pneg %p246
        $region106: #{shortcut_pool.1} parent=103 // pred_check_branch
          %944 = sbr.rel (%p942) target = $region108
        $region107: #{shortcut_pool.1} parent=103 // pred_region
          %p945 = scmp.eq.s32.totalorder %s30, 1
          %s946 = scalar_select %p945, %s31, 0
          %p947 = scmp.lt.s32.totalorder %s946, 0
          %s948 = scalar_select %p947, %s946, 0
          %s949 = smul.addr %s948, 2
          %s950 = smul.addr %s949, 8
          %s951 = scalar_lea.vmem %s8, %s950
        $region108: #{shortcut_pool.1} parent=103 // pred_fallthru
          _
      $region104: #{shortcut_pool.1} parent=5 // pred_fallthru
        _
    $region6: #{shortcut_pool.1} parent=1 // loop_footer
      %s23 = sadd.s32 1, %s19
    $region7: #{shortcut_pool.1} parent=1 // loop_footer_branch
      %18 = sbr.rel target = $region3
    $region8: #{shortcut_pool.1} parent=1 // loop_exit
      _
    %952 = vsyncpa [#allocation7], 1
    %s953 = scalar_lea.sflag [#allocation7], 1
    %954 = vsyncpa %s953, 1
    %955 = vsyncpa [#allocation9], 1

</llo_original>
